<compile_context>
chip_gen: v7x
topology: tpu7x:2x2x1
jax: 0.10.0
libtpu: 0.0.40
codegen_flags: <defaults>
</compile_context>

<pallas_src>
import jax
import jax.numpy as jnp
from jax.experimental import pallas as pl
from jax.experimental.pallas import tpu as pltpu


def _round_up(x: int, m: int) -> int:
    return ((x + m - 1) // m) * m


def _make_ls_ce_kernel(smoothing: float, n_total: int, tile_rows: int,
                       num_classes: int, has_pad: bool):
    confidence = 1.0 - smoothing
    inv_c = 1.0 / float(num_classes)
    w_off = smoothing * inv_c            # weight applied to every class
    w_tgt = confidence + w_off           # weight applied to the target class

    def kernel(x_ref, tgt_ref, out_ref, acc_ref):
        i = pl.program_id(0)

        @pl.when(i == 0)
        def _():
            acc_ref[0, 0] = jnp.float32(0.0)

        x = x_ref[...].astype(jnp.float32)            # (TN, C)
        tgt = tgt_ref[...]                            # (TN, 1) int32

        # Numerically stable log-sum-exp per row.
        m = jnp.max(x, axis=-1, keepdims=True)                      # (TN, 1)
        sum_exp = jnp.sum(jnp.exp(x - m), axis=-1, keepdims=True)   # (TN, 1)
        lse = m + jnp.log(sum_exp)                                  # (TN, 1)

        # conf*x[row, target[row]] + smoothing*mean(x[row]) fused into a
        # single weighted row-sum (no dynamic gather, no second reduction).
        col = jax.lax.broadcasted_iota(jnp.int32, x.shape, 1)
        w = jnp.where(col == tgt, w_tgt, w_off)                     # (TN, C)
        weighted = jnp.sum(x * w, axis=-1, keepdims=True)           # (TN, 1)

        # Per-row loss: lse - conf*x_t - smoothing*mean(x)
        loss = lse - weighted                                       # (TN, 1)

        if has_pad:
            # Mask rows past the true batch size (padded tail of last tile).
            row = i * tile_rows + jax.lax.broadcasted_iota(
                jnp.int32, loss.shape, 0)
            loss = jnp.where(row < n_total, loss, 0.0)

        acc_ref[0, 0] += jnp.sum(loss)

        @pl.when(i == pl.num_programs(0) - 1)
        def _():
            out_ref[0, 0] = acc_ref[0, 0] / n_total

    return kernel


def label_smoothing_cross_entropy(x, target, smoothing: float = 0.1,
                                  tile_rows: int | None = None):
    """x: (N, C) logits, target: (N,) int class indices. Returns scalar f32 loss."""
    n, c = x.shape
    itemsize = x.dtype.itemsize

    if tile_rows is None:
        # Aim for a ~4 MiB logits tile (multiple of 8 rows), capped at the
        # (padded) batch size.  Keeps 2x double-buffered blocks far below the
        # 64 MiB VMEM of v7x while being large enough to hide DMA on v5e/v6e.
        target_bytes = 4 * 1024 * 1024
        rows_for_budget = max(8, (target_bytes // max(1, c * itemsize)))
        rows_for_budget = max(8, (rows_for_budget // 8) * 8)
        tile_rows = min(_round_up(n, 8), rows_for_budget)
    tile_rows = max(8, _round_up(tile_rows, 8))

    num_tiles = pl.cdiv(n, tile_rows)
    n_pad = num_tiles * tile_rows
    has_pad = n_pad != n

    if has_pad:
        x = jnp.pad(x, ((0, n_pad - n), (0, 0)))
        target = jnp.pad(target, (0, n_pad - n))
    tgt = target.astype(jnp.int32).reshape(n_pad, 1)

    tile_bytes = tile_rows * c * itemsize
    # Double-buffered input tile + f32 working set + slack; safe on all chips.
    vmem_limit = int(min(48 * 1024 * 1024, max(16 * 1024 * 1024, 6 * tile_bytes)))

    out = pl.pallas_call(
        _make_ls_ce_kernel(smoothing, n, tile_rows, c, has_pad),
        out_shape=jax.ShapeDtypeStruct((1, 1), jnp.float32),
        grid_spec=pltpu.PrefetchScalarGridSpec(
            num_scalar_prefetch=0,
            grid=(num_tiles,),
            in_specs=[
                pl.BlockSpec((tile_rows, c), lambda i: (i, 0)),  # logits tile
                pl.BlockSpec((tile_rows, 1), lambda i: (i, 0)),  # target column tile
            ],
            out_specs=pl.BlockSpec(
                (1, 1), lambda i: (0, 0), memory_space=pltpu.SMEM
            ),
            scratch_shapes=[pltpu.SMEM((1, 1), jnp.float32)],
        ),
        compiler_params=pltpu.CompilerParams(
            dimension_semantics=("arbitrary",),   # carried scalar accumulator
            vmem_limit_bytes=vmem_limit,
        ),
    )(x, tgt)
    return out[0, 0]


def _reference(x, target, smoothing=0.1):
    confidence = 1.0 - smoothing
    logprobs = jax.nn.log_softmax(x.astype(jnp.float32), axis=-1)
    nll = -jnp.take_along_axis(logprobs, target[:, None], axis=-1)[:, 0]
    smooth = -jnp.mean(logprobs, axis=-1)
    return jnp.mean(confidence * nll + smoothing * smooth)


if __name__ == "__main__":
    key = jax.random.PRNGKey(0)
    kx, kt, kx2, kt2 = jax.random.split(key, 4)

    # Primary small case (batch=8 samples, 32 classes).
    N, C = 8, 32
    x = jax.random.normal(kx, (N, C), dtype=jnp.float32)
    target = jax.random.randint(kt, (N,), 0, C, dtype=jnp.int32)

    loss = label_smoothing_cross_entropy(x, target, smoothing=0.1)
    loss = jax.block_until_ready(loss)
    ref = _reference(x, target, smoothing=0.1)
    assert jnp.allclose(loss, ref, atol=1e-5, rtol=1e-5), (loss, ref)

    # Multi-tile case with a ragged batch (exercises accumulation + row mask).
    N2, C2 = 20, 128
    x2 = jax.random.normal(kx2, (N2, C2), dtype=jnp.float32)
    target2 = jax.random.randint(kt2, (N2,), 0, C2, dtype=jnp.int32)

    loss2 = label_smoothing_cross_entropy(x2, target2, smoothing=0.1,
                                          tile_rows=8)   # 3 tiles, last padded
    loss2 = jax.block_until_ready(loss2)
    ref2 = _reference(x2, target2, smoothing=0.1)
    assert jnp.allclose(loss2, ref2, atol=1e-5, rtol=1e-5), (loss2, ref2)

    print("KERNEL_OK")
</pallas_src>

<mosaic_0001>
module attributes {stable_mosaic.version = 11 : i64} {
  func.func @kernel(%arg0: i32, %arg1: memref<8x32xf32, #tpu.memory_space<vmem>>, %arg2: memref<8x1xi32, #tpu.memory_space<vmem>>, %arg3: memref<1x1xf32, #tpu.memory_space<smem>>, %arg4: memref<1x1xf32, #tpu.memory_space<smem>>) attributes {dimension_semantics = [#tpu.dimension_semantics<arbitrary>], iteration_bounds = array<i64: 1>, scalar_prefetch = 0 : i64, scratch_operands = 1 : i64, tpu.core_type = #tpu.core_type<tc>, window_params = [{transform_indices = @transform_0, window_bounds = array<i64: 8, 32>}, {transform_indices = @transform_1, window_bounds = array<i64: 8, 1>}, {transform_indices = @transform_2, window_bounds = array<i64: 1, 1>}]} {
    %c0_i32 = arith.constant 0 : i32
    %0 = arith.cmpi eq, %arg0, %c0_i32 : i32
    %1 = arith.extui %0 : i1 to i32
    %c0_i32_0 = arith.constant 0 : i32
    %2 = arith.cmpi ne, %1, %c0_i32_0 : i32
    scf.if %2 {
      %cst_15 = arith.constant 0.000000e+00 : f32
      %c0_16 = arith.constant 0 : index
      %c0_17 = arith.constant 0 : index
      %34 = memref.load %arg4[%c0_16, %c0_17] : memref<1x1xf32, #tpu.memory_space<smem>>
      memref.store %cst_15, %arg4[%c0_16, %c0_17] : memref<1x1xf32, #tpu.memory_space<smem>>
    } else {
    }
    %c0 = arith.constant 0 : index
    %c0_1 = arith.constant 0 : index
    %3 = vector.load %arg1[%c0, %c0_1] : memref<8x32xf32, #tpu.memory_space<vmem>>, vector<8x32xf32>
    %c0_2 = arith.constant 0 : index
    %c0_3 = arith.constant 0 : index
    %4 = vector.load %arg2[%c0_2, %c0_3] : memref<8x1xi32, #tpu.memory_space<vmem>>, vector<8x1xi32>
    %cst = arith.constant dense<0xFF800000> : vector<8xf32>
    %5 = vector.multi_reduction <maximumf>, %3, %cst [1] : vector<8x32xf32> to vector<8xf32>
    %6 = vector.shape_cast %5 : vector<8xf32> to vector<8x1xf32>
    %7 = vector.broadcast %6 : vector<8x1xf32> to vector<8x32xf32>
    %8 = arith.subf %3, %7 : vector<8x32xf32>
    %9 = math.exp %8 : vector<8x32xf32>
    %cst_4 = arith.constant dense<0.000000e+00> : vector<8xf32>
    %10 = vector.multi_reduction <add>, %9, %cst_4 [1] : vector<8x32xf32> to vector<8xf32>
    %11 = vector.shape_cast %10 : vector<8xf32> to vector<8x1xf32>
    %12 = math.log %11 : vector<8x1xf32>
    %13 = arith.addf %6, %12 : vector<8x1xf32>
    %14 = tpu.iota {dimensions = array<i32: 1>} : vector<8x32xi32>
    %15 = vector.broadcast %4 : vector<8x1xi32> to vector<8x32xi32>
    %16 = arith.cmpi eq, %14, %15 : vector<8x32xi32>
    %cst_5 = arith.constant 0.903124988 : f32
    %cst_6 = arith.constant 3.125000e-03 : f32
    %17 = vector.broadcast %cst_5 : f32 to vector<8x32xf32>
    %18 = vector.broadcast %cst_6 : f32 to vector<8x32xf32>
    %19 = arith.select %16, %17, %18 : vector<8x32xi1>, vector<8x32xf32>
    %20 = arith.mulf %3, %19 : vector<8x32xf32>
    %cst_7 = arith.constant dense<0.000000e+00> : vector<8xf32>
    %21 = vector.multi_reduction <add>, %20, %cst_7 [1] : vector<8x32xf32> to vector<8xf32>
    %22 = vector.shape_cast %21 : vector<8xf32> to vector<8x1xf32>
    %23 = arith.subf %13, %22 : vector<8x1xf32>
    %c0_8 = arith.constant 0 : index
    %c0_9 = arith.constant 0 : index
    %24 = memref.load %arg4[%c0_8, %c0_9] : memref<1x1xf32, #tpu.memory_space<smem>>
    %25 = vector.shape_cast %23 : vector<8x1xf32> to vector<1x8x1xf32>
    %cst_10 = arith.constant dense<0.000000e+00> : vector<1xf32>
    %26 = vector.multi_reduction <add>, %25, %cst_10 [1, 2] : vector<1x8x1xf32> to vector<1xf32>
    %27 = vector.shape_cast %26 : vector<1xf32> to vector<1x1x1xf32>
    %28 = vector.extract %27[0, 0, 0] : f32 from vector<1x1x1xf32>
    %29 = arith.addf %24, %28 : f32
    %c0_11 = arith.constant 0 : index
    %c0_12 = arith.constant 0 : index
    %30 = memref.load %arg4[%c0_11, %c0_12] : memref<1x1xf32, #tpu.memory_space<smem>>
    memref.store %29, %arg4[%c0_11, %c0_12] : memref<1x1xf32, #tpu.memory_space<smem>>
    %c0_i32_13 = arith.constant 0 : i32
    %31 = arith.cmpi eq, %arg0, %c0_i32_13 : i32
    %32 = arith.extui %31 : i1 to i32
    %c0_i32_14 = arith.constant 0 : i32
    %33 = arith.cmpi ne, %32, %c0_i32_14 : i32
    scf.if %33 {
      %c0_15 = arith.constant 0 : index
      %c0_16 = arith.constant 0 : index
      %34 = memref.load %arg4[%c0_15, %c0_16] : memref<1x1xf32, #tpu.memory_space<smem>>
      %cst_17 = arith.constant 8.000000e+00 : f32
      %35 = arith.divf %34, %cst_17 : f32
      %c0_18 = arith.constant 0 : index
      %c0_19 = arith.constant 0 : index
      %36 = memref.load %arg3[%c0_18, %c0_19] : memref<1x1xf32, #tpu.memory_space<smem>>
      memref.store %35, %arg3[%c0_18, %c0_19] : memref<1x1xf32, #tpu.memory_space<smem>>
    } else {
    }
    return
  }
  func.func @transform_0(%arg0: i32) -> (i32, i32) {
    %c0_i32 = arith.constant 0 : i32
    %c0_i32_0 = arith.constant 0 : i32
    return %arg0, %c0_i32 : i32, i32
  }
  func.func @transform_1(%arg0: i32) -> (i32, i32) {
    %c0_i32 = arith.constant 0 : i32
    %c0_i32_0 = arith.constant 0 : i32
    return %arg0, %c0_i32 : i32, i32
  }
  func.func @transform_2(%arg0: i32) -> (i32, i32) {
    %c0_i32 = arith.constant 0 : i32
    %c0_i32_0 = arith.constant 0 : i32
    %c0_i32_1 = arith.constant 0 : i32
    return %c0_i32, %c0_i32_0 : i32, i32
  }
}

</mosaic_0001>

<llo_original>
// kernel: tpu_custom_call.1
$region0: #{tpu_custom_call.1}
  #allocation0 [shape = 'u32[]', space=smem, size = 0x4, offset = 0x4, fixed_abs, tag = 'smem constant byte address 0x4 - core index']
  #allocation1 [shape = 'u32[144,128]{1,0:T(1,128)}', space=vmem, size = 0x12000, scoped, tag = 'internal scratch']
  #allocation2 [shape = 'f32[1,1]{1,0:T(1,128)}', space=smem, size = 0x200, scoped, tag = 'scratch operand']
  %s0 = inlined_call_operand.vmem [shape: f32[8,32], index: 0, kind: input, shape index: {}]
  %s1 = inlined_call_operand.vmem [shape: s32[8,1], index: 1, kind: input, shape index: {}]
  %s2 = inlined_call_operand.hbm [shape: f32[1,1], index: 2, kind: output, shape index: {}]
  %s3 = sld [smem:[#allocation0]]
  $region26: #{tpu_custom_call.1} parent=0
    _
  %s5 = ssub.s32 1, %s3
  %s6 = scalar_select 0, %s5, %s3
  $region1: #{tpu_custom_call.1} parent=0
    #allocation3 [shape = 'u8[512]{0}', space=smem, size = 0x200, scoped, tag = 'output window, operand 0, single buffered']
    #allocation4 [shape = 's32[1]{0}', space=sflag, size = 0x4, scoped, tag = 'scoped memory for tpu_custom_call.1']
    %7 = vsyncpa [#allocation4], 0
    // Predicated region
    $region2: #{tpu_custom_call.1} parent=1 // pred_check
      _
    $region3: #{tpu_custom_call.1} parent=1 // pred_check_branch
      %9 = sbr.rel (0) target = $region5
    $region4: #{tpu_custom_call.1} parent=1 // pred_region
      _
    $region5: #{tpu_custom_call.1} parent=1 // pred_fallthru
      _
    // Predicated region
    $region6: #{tpu_custom_call.1} parent=1 // pred_check
      _
    $region7: #{tpu_custom_call.1} parent=1 // pred_check_branch
      %11 = sbr.rel (0) target = $region9
    $region8: #{tpu_custom_call.1} parent=1 // pred_region
      _
    $region9: #{tpu_custom_call.1} parent=1 // pred_fallthru
      _
    %p12 = scmp.eq.s32.totalorder 0, 0
    // Predicated region
    $region10: #{tpu_custom_call.1} parent=1 // pred_check
      %p13 = pneg %p12
    $region11: #{tpu_custom_call.1} parent=1 // pred_check_branch
      %15 = sbr.rel (%p13) target = $region13
    $region12: #{tpu_custom_call.1} parent=1 // pred_region
      %s16 = scalar_lea.smem [#allocation2], 0
      %17 = sst [smem:[%s16]] 0.0
    $region13: #{tpu_custom_call.1} parent=1 // pred_fallthru
      _
    %v18 = vld [vmem:[%s0] sm:$0xff]
    %v19 = vld [vmem:[%s1] sm:$0xff]
    %vm20 = vcmask 261120
    %v21 = vsel %vm20, %v18, -inf
    %22 = vmax.xlane.f32.xlu0 %v21
    %v23 = vpop.xlane.xlu0 %22
    %v24 = vsub.f32 %v18, %v23
    %v25 = vmul.f32 %v24, 1.442695
    %v26 = vpow.pop %v25
    %v27 = vsel %vm20, %v26, 0.0
    %28 = vadd.xlane.f32.xlu0 %v27
    %v29 = vpop.xlane.xlu0 %28
    %v30 = vlog2.pop %v29
    %v31 = vmul.f32 %v30, 0.6931472
    %v32 = vadd.f32 %v23, %v31
    %v33 = vlaneseq
    %v34 = vand.u32 %v33, 127
    %35 = vset.pattern.permute.xlu0 0
    %36 = vperm.xlu0 %35, %v19
    %v37 = vpop.permute.xlu0 %36
    %vm38 = vcmp.eq.s32.totalorder %v34, %v37
    %v39 = vsel %vm38, 0.903125, 0.003125
    %v40 = vmul.f32 %v18, %v39
    %v41 = vsel %vm20, %v40, 0.0
    %42 = vadd.xlane.f32.xlu0 %v41
    %v43 = vpop.xlane.xlu0 %42
    %v44 = vsub.f32 %v32, %v43
    %s45 = sld [smem:[#allocation2]]
    %vm46 = vcmask 7168
    %v47 = vsel %vm46, %v44, 0.0
    %48 = vadd.xlane.f32.xlu0 %v47
    %v49 = vpop.xlane.xlu0 %48
    %v50 = vrot.slane %v49, 4
    %v51 = vadd.f32 %v49, %v50
    %v52 = vrot.slane %v51, 2
    %v53 = vadd.f32 %v51, %v52
    %v54 = vrot.slane %v53, 1
    %v55 = vadd.f32 %v53, %v54
    %s56 = vtos %v55
    %s57 = sadd.f32 %s45, %s56
    %s58 = scalar_lea.smem [#allocation2], 0
    %59 = sst [smem:[%s58]] %s57
    // Predicated region
    $region14: #{tpu_custom_call.1} parent=1 // pred_check
      %p60 = pneg %p12
    $region15: #{tpu_custom_call.1} parent=1 // pred_check_branch
      %62 = sbr.rel (%p60) target = $region17
    $region16: #{tpu_custom_call.1} parent=1 // pred_region
      %s63 = sld [smem:[#allocation2]]
      %v64 = vrcp.pop 8.0
      %s65 = vtos %v64
      %s66 = smul.f32 %s63, %s65
      %s67 = scalar_lea.smem [#allocation3], 0
      %68 = sst [smem:[%s67]] %s66
    $region17: #{tpu_custom_call.1} parent=1 // pred_fallthru
      _
    // Predicated region
    $region18: #{tpu_custom_call.1} parent=1 // pred_check
      _
    $region19: #{tpu_custom_call.1} parent=1 // pred_check_branch
      %70 = sbr.rel (0) target = $region21
    $region20: #{tpu_custom_call.1} parent=1 // pred_region
      %s72 = ssub.s32 16, 16
      %73 = vsyncadd [#allocation4], %s72
      %76 = dma.smem_to_hbm [#allocation3], 16, %s2, [#allocation4]
    $region21: #{tpu_custom_call.1} parent=1 // pred_fallthru
      _
    // Predicated region
    $region22: #{tpu_custom_call.1} parent=1 // pred_check
      _
    $region23: #{tpu_custom_call.1} parent=1 // pred_check_branch
      %78 = sbr.rel (0) target = $region25
    $region24: #{tpu_custom_call.1} parent=1 // pred_region
      %79 = dma.done [#allocation4], 16
    $region25: #{tpu_custom_call.1} parent=1 // pred_fallthru
      _
    %80 = sfence
    %81 = vsyncpa [#allocation4], 1

</llo_original>
